<compile_context>
chip_gen: v5e
topology: v5e:2x2
jax: 0.10.0
libtpu: 0.0.40
codegen_flags: <defaults>
</compile_context>

<pallas_src>
import math
import functools

import jax
import jax.numpy as jnp
from jax.experimental import pallas as pl
from jax.experimental.pallas import tpu as pltpu

_INV_SQRT2 = 1.0 / math.sqrt(2.0)


def _round_up(a, b):
    return ((a + b - 1) // b) * b


def _mlp_kernel(x_ref, w1_ref, b1_ref, w2_ref, b2_ref, o_ref, acc_ref):
    k = pl.program_id(1)

    @pl.when(k == 0)
    def _():
        acc_ref[...] = jnp.zeros_like(acc_ref)

    # fc1 slice: [tm, C_in] @ [C_in, th] -> f32 accumulate on the MXU
    h = jnp.dot(x_ref[...], w1_ref[...], preferred_element_type=jnp.float32)
    h = h + b1_ref[...]  # bias in f32
    # exact GELU (erf formulation, matches nn.GELU default), pointwise in f32
    h = 0.5 * h * (1.0 + jax.lax.erf(h * _INV_SQRT2))
    # fc2 partial product: [tm, th] @ [th, C_out_pad], accumulated in f32 scratch
    acc_ref[...] += jnp.dot(h.astype(w2_ref.dtype), w2_ref[...],
                            preferred_element_type=jnp.float32)

    @pl.when(k == pl.num_programs(1) - 1)
    def _():
        o_ref[...] = (acc_ref[...] + b2_ref[...]).astype(o_ref.dtype)


@functools.partial(
    jax.jit, static_argnames=("block_rows", "block_hidden", "compute_dtype")
)
def mlp_pallas(x, w1, b1, w2, b2, *, block_rows=256, block_hidden=512,
               compute_dtype=jnp.bfloat16):
    """x: [..., C_in]; w1: [C_in, H]; b1: [H]; w2: [H, C_out]; b2: [C_out]."""
    orig_shape = x.shape
    c_in = int(orig_shape[-1])
    hidden = int(w1.shape[1])
    c_out = int(w2.shape[1])
    out_dtype = x.dtype

    # ---- row tiling (padded, so arbitrary token counts work) ----
    x2 = x.reshape(-1, c_in)
    n_rows = int(x2.shape[0])
    block_rows = _round_up(int(block_rows), 8)
    tm = min(block_rows, _round_up(n_rows, 8))
    rows_pad = _round_up(n_rows, tm)

    # ---- hidden tiling (reduction axis for fc2) ----
    block_hidden = int(block_hidden)
    if hidden <= block_hidden:
        th = hidden
        hidden_pad = hidden
    else:
        th = _round_up(block_hidden, 128)
        hidden_pad = _round_up(hidden, th)

    # ---- lane-dense output ----
    c_out_pad = _round_up(c_out, 128)

    # ---- pad / cast operands (zero padding is exact: GELU(0)=0, zero weight rows) ----
    x2p = jnp.pad(x2.astype(compute_dtype), ((0, rows_pad - n_rows), (0, 0)))
    w1p = jnp.pad(w1.astype(compute_dtype), ((0, 0), (0, hidden_pad - hidden)))
    b1p = jnp.pad(b1.astype(jnp.float32), (0, hidden_pad - hidden)).reshape(1, hidden_pad)
    w2p = jnp.pad(w2.astype(compute_dtype),
                  ((0, hidden_pad - hidden), (0, c_out_pad - c_out)))
    b2p = jnp.pad(b2.astype(jnp.float32), (0, c_out_pad - c_out)).reshape(1, c_out_pad)

    grid = (rows_pad // tm, hidden_pad // th)

    # ---- VMEM budget (double-buffered inputs/outputs + f32 accumulator) ----
    bpe = jnp.dtype(compute_dtype).itemsize
    obe = jnp.dtype(out_dtype).itemsize
    vmem_est = (
        2 * (tm * c_in * bpe + c_in * th * bpe + th * 4
             + th * c_out_pad * bpe + c_out_pad * 4 + tm * c_out_pad * obe)
        + tm * c_out_pad * 4
    )
    vmem_limit = int(min(max(2 * vmem_est, 32 * 1024 * 1024), 96 * 1024 * 1024))

    cost = pl.CostEstimate(
        flops=2 * rows_pad * (c_in * hidden_pad + hidden_pad * c_out_pad),
        transcendentals=rows_pad * hidden_pad,
        bytes_accessed=(x2p.size * bpe + w1p.size * bpe + w2p.size * bpe
                        + b1p.size * 4 + b2p.size * 4 + rows_pad * c_out_pad * obe),
    )

    out2 = pl.pallas_call(
        _mlp_kernel,
        out_shape=jax.ShapeDtypeStruct((rows_pad, c_out_pad), out_dtype),
        grid_spec=pltpu.PrefetchScalarGridSpec(
            num_scalar_prefetch=0,
            grid=grid,
            in_specs=[
                pl.BlockSpec((tm, c_in), lambda i, k: (i, 0)),
                pl.BlockSpec((c_in, th), lambda i, k: (0, k)),
                pl.BlockSpec((1, th), lambda i, k: (0, k)),
                pl.BlockSpec((th, c_out_pad), lambda i, k: (k, 0)),
                pl.BlockSpec((1, c_out_pad), lambda i, k: (0, 0)),
            ],
            out_specs=pl.BlockSpec((tm, c_out_pad), lambda i, k: (i, 0)),
            scratch_shapes=[pltpu.VMEM((tm, c_out_pad), jnp.float32)],
        ),
        compiler_params=pltpu.CompilerParams(
            dimension_semantics=("parallel", "arbitrary"),
            vmem_limit_bytes=vmem_limit,
        ),
        cost_estimate=cost,
    )(x2p, w1p, b1p, w2p, b2p)

    out2 = out2[:n_rows, :c_out]
    return out2.reshape(*orig_shape[:-1], c_out)


def _reference_mlp(x, w1, b1, w2, b2, compute_dtype=jnp.float32):
    xd = x.astype(compute_dtype)
    h = jnp.dot(xd, w1.astype(compute_dtype),
                preferred_element_type=jnp.float32) + b1.astype(jnp.float32)
    h = 0.5 * h * (1.0 + jax.lax.erf(h * _INV_SQRT2))
    o = jnp.dot(h.astype(compute_dtype), w2.astype(compute_dtype),
                preferred_element_type=jnp.float32) + b2.astype(jnp.float32)
    return o.astype(x.dtype)


if __name__ == "__main__":
    # Small shapes consistent with a ViT MLP block.
    key = jax.random.PRNGKey(0)
    kx, kw1, kb1, kw2, kb2, kx2, kw3, kb3, kw4, kb4 = jax.random.split(key, 10)

    # ---- case 1: batch=2, seq=8, in=32, hidden=64, out=32 (single hidden tile) ----
    B, S, C_IN, HIDDEN, C_OUT = 2, 8, 32, 64, 32
    x = jax.random.normal(kx, (B, S, C_IN), dtype=jnp.float32)
    # nn.Linear weights stored pre-transposed as [in, out] for row-major matmul.
    w1 = jax.random.normal(kw1, (C_IN, HIDDEN), dtype=jnp.float32) * 0.02
    b1 = jax.random.normal(kb1, (HIDDEN,), dtype=jnp.float32) * 0.02
    w2 = jax.random.normal(kw2, (HIDDEN, C_OUT), dtype=jnp.float32) * 0.02
    b2 = jax.random.normal(kb2, (C_OUT,), dtype=jnp.float32) * 0.02

    # default fast path: bf16 MXU operands, f32 accumulation / pointwise
    out_bf16 = jax.block_until_ready(mlp_pallas(x, w1, b1, w2, b2))
    ref_bf16 = _reference_mlp(x, w1, b1, w2, b2, compute_dtype=jnp.bfloat16)
    assert out_bf16.shape == (B, S, C_OUT)
    assert jnp.allclose(out_bf16, ref_bf16, atol=2e-3, rtol=2e-3), "bf16 path mismatch"

    # f32 compute path (exact semantics check)
    out_f32 = jax.block_until_ready(
        mlp_pallas(x, w1, b1, w2, b2, compute_dtype=jnp.float32))
    ref_f32 = _reference_mlp(x, w1, b1, w2, b2, compute_dtype=jnp.float32)
    assert jnp.allclose(out_f32, ref_f32, atol=1e-4, rtol=1e-4), "f32 path mismatch"

    # ---- case 2: hidden > block_hidden -> exercises multi-step accumulator (P3) ----
    B2, S2, C_IN2, HIDDEN2, C_OUT2 = 2, 8, 32, 256, 32
    x_b = jax.random.normal(kx2, (B2, S2, C_IN2), dtype=jnp.float32)
    w1_b = jax.random.normal(kw3, (C_IN2, HIDDEN2), dtype=jnp.float32) * 0.02
    b1_b = jax.random.normal(kb3, (HIDDEN2,), dtype=jnp.float32) * 0.02
    w2_b = jax.random.normal(kw4, (HIDDEN2, C_OUT2), dtype=jnp.float32) * 0.02
    b2_b = jax.random.normal(kb4, (C_OUT2,), dtype=jnp.float32) * 0.02

    out_acc = jax.block_until_ready(
        mlp_pallas(x_b, w1_b, b1_b, w2_b, b2_b,
                   block_rows=256, block_hidden=128, compute_dtype=jnp.float32))
    ref_acc = _reference_mlp(x_b, w1_b, b1_b, w2_b, b2_b, compute_dtype=jnp.float32)
    assert out_acc.shape == (B2, S2, C_OUT2)
    assert jnp.allclose(out_acc, ref_acc, atol=1e-4, rtol=1e-4), "accumulator path mismatch"

    print("KERNEL_OK")
</pallas_src>

<mosaic_0001>
module attributes {stable_mosaic.version = 11 : i64} {
  func.func @_mlp_kernel(%arg0: i32, %arg1: i32, %arg2: memref<16x32xbf16, #tpu.memory_space<vmem>>, %arg3: memref<32x64xbf16, #tpu.memory_space<vmem>>, %arg4: memref<1x64xf32, #tpu.memory_space<vmem>>, %arg5: memref<64x128xbf16, #tpu.memory_space<vmem>>, %arg6: memref<1x128xf32, #tpu.memory_space<vmem>>, %arg7: memref<16x128xf32, #tpu.memory_space<vmem>>, %arg8: memref<16x128xf32, #tpu.memory_space<vmem>>) attributes {dimension_semantics = [#tpu.dimension_semantics<parallel>, #tpu.dimension_semantics<arbitrary>], iteration_bounds = array<i64: 1, 1>, scalar_prefetch = 0 : i64, scratch_operands = 1 : i64, tpu.core_type = #tpu.core_type<tc>, window_params = [{transform_indices = @transform_0, window_bounds = array<i64: 16, 32>}, {transform_indices = @transform_1, window_bounds = array<i64: 32, 64>}, {transform_indices = @transform_2, window_bounds = array<i64: 1, 64>}, {transform_indices = @transform_3, window_bounds = array<i64: 64, 128>}, {pipeline_mode = #tpu.pipeline_mode<synchronous>, transform_indices = @transform_4, window_bounds = array<i64: 1, 128>}, {transform_indices = @transform_5, window_bounds = array<i64: 16, 128>}]} {
    %c0_i32 = arith.constant 0 : i32
    %0 = arith.cmpi eq, %arg1, %c0_i32 : i32
    %1 = arith.extui %0 : i1 to i32
    %c0_i32_0 = arith.constant 0 : i32
    %2 = arith.cmpi ne, %1, %c0_i32_0 : i32
    scf.if %2 {
      %cst_18 = arith.constant 0.000000e+00 : f32
      %26 = vector.broadcast %cst_18 : f32 to vector<16x128xf32>
      %c0_19 = arith.constant 0 : index
      %c0_20 = arith.constant 0 : index
      %27 = vector.load %arg8[%c0_19, %c0_20] : memref<16x128xf32, #tpu.memory_space<vmem>>, vector<16x128xf32>
      tpu.vector_store %arg8[%c0_19, %c0_20], %26 {strides = array<i32>} : memref<16x128xf32, #tpu.memory_space<vmem>>, vector<16x128xf32>,
    } else {
    }
    %c0 = arith.constant 0 : index
    %c0_1 = arith.constant 0 : index
    %3 = vector.load %arg2[%c0, %c0_1] : memref<16x32xbf16, #tpu.memory_space<vmem>>, vector<16x32xbf16>
    %c0_2 = arith.constant 0 : index
    %c0_3 = arith.constant 0 : index
    %4 = vector.load %arg3[%c0_2, %c0_3] : memref<32x64xbf16, #tpu.memory_space<vmem>>, vector<32x64xbf16>
    %cst = arith.constant dense<0.000000e+00> : vector<16x64xf32>
    %5 = tpu.matmul %3, %4, %cst {dimension_numbers = #tpu.dot_dimension_numbers<[1], [0], [0], [1], [0, 0, 1, 1], [], []>} : vector<16x32xbf16>, vector<32x64xbf16>, vector<16x64xf32> -> vector<16x64xf32>
    %c0_4 = arith.constant 0 : index
    %c0_5 = arith.constant 0 : index
    %6 = vector.load %arg4[%c0_4, %c0_5] : memref<1x64xf32, #tpu.memory_space<vmem>>, vector<1x64xf32>
    %7 = vector.broadcast %6 : vector<1x64xf32> to vector<16x64xf32>
    %8 = arith.addf %5, %7 : vector<16x64xf32>
    %cst_6 = arith.constant 5.000000e-01 : f32
    %9 = vector.broadcast %cst_6 : f32 to vector<16x64xf32>
    %10 = arith.mulf %9, %8 : vector<16x64xf32>
    %cst_7 = arith.constant 0.707106769 : f32
    %11 = vector.broadcast %cst_7 : f32 to vector<16x64xf32>
    %12 = arith.mulf %8, %11 : vector<16x64xf32>
    %13 = math.erf %12 : vector<16x64xf32>
    %cst_8 = arith.constant 1.000000e+00 : f32
    %14 = vector.broadcast %cst_8 : f32 to vector<16x64xf32>
    %15 = arith.addf %14, %13 : vector<16x64xf32>
    %16 = arith.mulf %10, %15 : vector<16x64xf32>
    %c0_9 = arith.constant 0 : index
    %c0_10 = arith.constant 0 : index
    %17 = vector.load %arg8[%c0_9, %c0_10] : memref<16x128xf32, #tpu.memory_space<vmem>>, vector<16x128xf32>
    %18 = arith.truncf %16 : vector<16x64xf32> to vector<16x64xbf16>
    %c0_11 = arith.constant 0 : index
    %c0_12 = arith.constant 0 : index
    %19 = vector.load %arg5[%c0_11, %c0_12] : memref<64x128xbf16, #tpu.memory_space<vmem>>, vector<64x128xbf16>
    %cst_13 = arith.constant dense<0.000000e+00> : vector<16x128xf32>
    %20 = tpu.matmul %18, %19, %cst_13 {dimension_numbers = #tpu.dot_dimension_numbers<[1], [0], [0], [1], [0, 0, 1, 1], [], []>} : vector<16x64xbf16>, vector<64x128xbf16>, vector<16x128xf32> -> vector<16x128xf32>
    %21 = arith.addf %17, %20 : vector<16x128xf32>
    %c0_14 = arith.constant 0 : index
    %c0_15 = arith.constant 0 : index
    %22 = vector.load %arg8[%c0_14, %c0_15] : memref<16x128xf32, #tpu.memory_space<vmem>>, vector<16x128xf32>
    tpu.vector_store %arg8[%c0_14, %c0_15], %21 {strides = array<i32>} : memref<16x128xf32, #tpu.memory_space<vmem>>, vector<16x128xf32>,
    %c0_i32_16 = arith.constant 0 : i32
    %23 = arith.cmpi eq, %arg1, %c0_i32_16 : i32
    %24 = arith.extui %23 : i1 to i32
    %c0_i32_17 = arith.constant 0 : i32
    %25 = arith.cmpi ne, %24, %c0_i32_17 : i32
    scf.if %25 {
      %c0_18 = arith.constant 0 : index
      %c0_19 = arith.constant 0 : index
      %26 = vector.load %arg8[%c0_18, %c0_19] : memref<16x128xf32, #tpu.memory_space<vmem>>, vector<16x128xf32>
      %c0_20 = arith.constant 0 : index
      %c0_21 = arith.constant 0 : index
      %27 = vector.load %arg6[%c0_20, %c0_21] : memref<1x128xf32, #tpu.memory_space<vmem>>, vector<1x128xf32>
      %28 = vector.broadcast %27 : vector<1x128xf32> to vector<16x128xf32>
      %29 = arith.addf %26, %28 : vector<16x128xf32>
      %c0_22 = arith.constant 0 : index
      %c0_23 = arith.constant 0 : index
      %30 = vector.load %arg7[%c0_22, %c0_23] : memref<16x128xf32, #tpu.memory_space<vmem>>, vector<16x128xf32>
      tpu.vector_store %arg7[%c0_22, %c0_23], %29 {strides = array<i32>} : memref<16x128xf32, #tpu.memory_space<vmem>>, vector<16x128xf32>,
    } else {
    }
    return
  }
  func.func @transform_0(%arg0: i32, %arg1: i32) -> (i32, i32) {
    %c0_i32 = arith.constant 0 : i32
    %c0_i32_0 = arith.constant 0 : i32
    return %arg0, %c0_i32 : i32, i32
  }
  func.func @transform_1(%arg0: i32, %arg1: i32) -> (i32, i32) {
    %c0_i32 = arith.constant 0 : i32
    %c0_i32_0 = arith.constant 0 : i32
    return %c0_i32, %arg1 : i32, i32
  }
  func.func @transform_2(%arg0: i32, %arg1: i32) -> (i32, i32) {
    %c0_i32 = arith.constant 0 : i32
    %c0_i32_0 = arith.constant 0 : i32
    return %c0_i32, %arg1 : i32, i32
  }
  func.func @transform_3(%arg0: i32, %arg1: i32) -> (i32, i32) {
    %c0_i32 = arith.constant 0 : i32
    %c0_i32_0 = arith.constant 0 : i32
    return %arg1, %c0_i32 : i32, i32
  }
  func.func @transform_4(%arg0: i32, %arg1: i32) -> (i32, i32) {
    %c0_i32 = arith.constant 0 : i32
    %c0_i32_0 = arith.constant 0 : i32
    %c0_i32_1 = arith.constant 0 : i32
    return %c0_i32, %c0_i32_0 : i32, i32
  }
  func.func @transform_5(%arg0: i32, %arg1: i32) -> (i32, i32) {
    %c0_i32 = arith.constant 0 : i32
    %c0_i32_0 = arith.constant 0 : i32
    return %arg0, %c0_i32 : i32, i32
  }
}

</mosaic_0001>

<llo_original>
// kernel: mlp_pallas.1
$region0: #{mlp_pallas.1}
  #allocation0 [shape = 'u32[]', space=smem, size = 0x4, offset = 0x4, fixed_abs, tag = 'smem constant byte address 0x4 - core index']
  #allocation1 [shape = 'u32[72,128]{1,0:T(1,128)}', space=vmem, size = 0x9000, scoped, tag = 'internal scratch']
  #allocation2 [shape = 'f32[16,128]{1,0:T(8,128)}', space=vmem, size = 0x2000, scoped, tag = 'scratch operand']
  %s0 = inlined_call_operand.vmem [shape: bf16[16,32], index: 0, kind: input, shape index: {}]
  %s1 = inlined_call_operand.vmem [shape: bf16[32,64], index: 1, kind: input, shape index: {}]
  %s2 = inlined_call_operand.vmem [shape: f32[1,64], index: 2, kind: input, shape index: {}]
  %s3 = inlined_call_operand.vmem [shape: bf16[64,128], index: 3, kind: input, shape index: {}]
  %s4 = inlined_call_operand.vmem [shape: f32[1,128], index: 4, kind: input, shape index: {}]
  %s5 = inlined_call_operand.vmem [shape: f32[16,128], index: 5, kind: output, shape index: {}]
  %s6 = sld [smem:[#allocation0]]
  $region38: #{mlp_pallas.1} parent=0
    _
  %s8 = ssub.s32 1, %s6
  %s9 = scalar_select 0, %s8, %s6
  // Predicated region
  $region2: #{mlp_pallas.1} parent=0 // pred_check
    _
  $region3: #{mlp_pallas.1} parent=0 // pred_check_branch
    %11 = sbr.rel (0) target = $region5
  $region4: #{mlp_pallas.1} parent=0 // pred_region
    _
  $region5: #{mlp_pallas.1} parent=0 // pred_fallthru
    _
  // Predicated region
  $region6: #{mlp_pallas.1} parent=0 // pred_check
    _
  $region7: #{mlp_pallas.1} parent=0 // pred_check_branch
    %13 = sbr.rel (0) target = $region9
  $region8: #{mlp_pallas.1} parent=0 // pred_region
    _
  $region9: #{mlp_pallas.1} parent=0 // pred_fallthru
    _
  // Predicated region
  $region10: #{mlp_pallas.1} parent=0 // pred_check
    _
  $region11: #{mlp_pallas.1} parent=0 // pred_check_branch
    %15 = sbr.rel (0) target = $region13
  $region12: #{mlp_pallas.1} parent=0 // pred_region
    _
  $region13: #{mlp_pallas.1} parent=0 // pred_fallthru
    _
  // Predicated region
  $region14: #{mlp_pallas.1} parent=0 // pred_check
    _
  $region15: #{mlp_pallas.1} parent=0 // pred_check_branch
    %17 = sbr.rel (0) target = $region17
  $region16: #{mlp_pallas.1} parent=0 // pred_region
    _
  $region17: #{mlp_pallas.1} parent=0 // pred_fallthru
    _
  // Predicated region
  $region18: #{mlp_pallas.1} parent=0 // pred_check
    _
  $region19: #{mlp_pallas.1} parent=0 // pred_check_branch
    %19 = sbr.rel (0) target = $region21
  $region20: #{mlp_pallas.1} parent=0 // pred_region
    _
  $region21: #{mlp_pallas.1} parent=0 // pred_fallthru
    _
  %p21 = scmp.eq.s32.totalorder 0, 0
  // Predicated region
  $region22: #{mlp_pallas.1} parent=0 // pred_check
    %p22 = pneg %p21
  $region23: #{mlp_pallas.1} parent=0 // pred_check_branch
    %24 = sbr.rel (%p22) target = $region25
  $region24: #{mlp_pallas.1} parent=0 // pred_region
    %25 = vst [vmem:[#allocation2] sm:$0xff] 0.0
    %26 = vst [vmem:[#allocation2 + $0x8] sm:$0xff] 0.0
  $region25: #{mlp_pallas.1} parent=0 // pred_fallthru
    _
  %v27 = vld [vmem:[%s0] sm:$0xf]
  %v28 = vld [vmem:[%s0 + $0x4] sm:$0xf]
  %v29 = vld [vmem:[%s1] sm:$0xf]
  %v30 = vld [vmem:[%s1 + $0x4] sm:$0xf]
  %v31 = vld [vmem:[%s1 + $0x8] sm:$0xf]
  %v32 = vld [vmem:[%s1 + $0xc] sm:$0xf]
  %v33 = vld [vmem:[%s2] sm:$0x1]
  %v35 = vperm.slane %v33, 0
  %v39 = vunpack.c.l.b16 %v27
  %v40 = vunpack.c.l.b16 %v28
  %v41 = vpack.c.b16 %v40, %v39
  %v46 = vunpack.c.l.b16 %v29
  %v47 = vunpack.c.l.b16 %v30
  %v48 = vunpack.c.l.b16 %v31
  %v49 = vunpack.c.l.b16 %v32
  %v50 = vpack.c.b16 %v47, %v46
  %v51 = vpack.c.b16 %v49, %v48
  %vm54 = vcmask 261120
  %v56 = vsel %vm54, %v41, 0
  %58 = vmatpush.bf16.msra.mxu0 0
  %59 = vmatpush.bf16.msra.mxu0 0
  %60 = vmatpush.bf16.msra.mxu0 0
  %61 = vmatpush.bf16.msra.mxu0 0
  %62 = vmatpush.bf16.msra.mxu0 0
  %63 = vmatpush.bf16.msra.mxu0 0
  %64 = vmatpush.bf16.msra.mxu0 %v51
  %65 = vmatpush.bf16.msra.mxu0 %v50
  %66 = vmatmul.bf16.gmra.mxu0 %v56
  %v67 = vpop.f32.mrf.mxu0
  %v68 = vadd.f32 %v35, %v67
  %v69 = vpop.f32.mrf.mxu0
  %v70 = vadd.f32 %v35, %v69
  %71 = vdwg.mxu0
  %v72 = vmul.f32 %v68, 0.5
  %v73 = vmul.f32 %v70, 0.5
  %v74 = vmul.f32 %v68, 0.70710677
  %v75 = vmul.f32 %v70, 0.70710677
  %v76 = vmul.f32 %v74, %v74
  %v77 = vmin.f32 16.0, %v76
  %v78 = vmul.f32 %v77, 2.1237322e-06
  %v79 = vadd.f32 %v78, 0.00028619796
  %v80 = vmul.f32 %v77, %v79
  %v81 = vadd.f32 %v80, 0.0036580483
  %v82 = vmul.f32 %v77, %v81
  %v83 = vadd.f32 %v82, 0.05243302
  %v84 = vmul.f32 %v77, %v83
  %v85 = vadd.f32 %v84, 0.18741608
  %v86 = vmul.f32 %v77, %v85
  %v87 = vadd.f32 %v86, 1.1283791
  %v88 = vmul.f32 %v74, %v87
  %v89 = vmul.f32 %v77, 3.8918573e-05
  %v90 = vadd.f32 %v89, 0.001143296
  %v91 = vmul.f32 %v77, %v90
  %v92 = vadd.f32 %v91, 0.014752088
  %v93 = vmul.f32 %v77, %v92
  %v94 = vadd.f32 %v93, 0.112945676
  %v95 = vmul.f32 %v77, %v94
  %v96 = vadd.f32 %v95, 0.4994258
  %v97 = vmul.f32 %v77, %v96
  %v98 = vadd.f32 %v97, 1.0
  %v99 = vrcp.pop %v98
  %v100 = vmul.f32 %v98, %v99
  %v101 = vsub.f32 1.0, %v100
  %v102 = vmul.f32 %v99, %v101
  %v103 = vadd.f32 %v99, %v102
  %vm104 = vweird.f32 %v98
  %vm105 = vweird.f32 %v99
  %vm106 = vmor %vm104, %vm105
  %v107 = vsel %vm106, %v99, %v103
  %v108 = vand.u32 2147483647, %v98
  %vm109 = vcmp.eq.f32.partialorder %v108, 8.507059e+37
  %v110 = vand.u32 %v98, 2147483648
  %v111 = vor.u32 1.1754944e-38, %v110
  %v112 = vsel %vm109, %v111, %v107
  %v113 = vmul.f32 %v88, %v112
  %v114 = vmin.f32 %v113, 1.0
  %v115 = vmax.f32 %v114, -1.0
  %v116 = vmul.f32 %v75, %v75
  %v117 = vmin.f32 16.0, %v116
  %v118 = vmul.f32 %v117, 2.1237322e-06
  %v119 = vadd.f32 %v118, 0.00028619796
  %v120 = vmul.f32 %v117, %v119
  %v121 = vadd.f32 %v120, 0.0036580483
  %v122 = vmul.f32 %v117, %v121
  %v123 = vadd.f32 %v122, 0.05243302
  %v124 = vmul.f32 %v117, %v123
  %v125 = vadd.f32 %v124, 0.18741608
  %v126 = vmul.f32 %v117, %v125
  %v127 = vadd.f32 %v126, 1.1283791
  %v128 = vmul.f32 %v75, %v127
  %v129 = vmul.f32 %v117, 3.8918573e-05
  %v130 = vadd.f32 %v129, 0.001143296
  %v131 = vmul.f32 %v117, %v130
  %v132 = vadd.f32 %v131, 0.014752088
  %v133 = vmul.f32 %v117, %v132
  %v134 = vadd.f32 %v133, 0.112945676
  %v135 = vmul.f32 %v117, %v134
  %v136 = vadd.f32 %v135, 0.4994258
  %v137 = vmul.f32 %v117, %v136
  %v138 = vadd.f32 %v137, 1.0
  %v139 = vrcp.pop %v138
  %v140 = vmul.f32 %v138, %v139
  %v141 = vsub.f32 1.0, %v140
  %v142 = vmul.f32 %v139, %v141
  %v143 = vadd.f32 %v139, %v142
  %vm144 = vweird.f32 %v138
  %vm145 = vweird.f32 %v139
  %vm146 = vmor %vm144, %vm145
  %v147 = vsel %vm146, %v139, %v143
  %v148 = vand.u32 2147483647, %v138
  %vm149 = vcmp.eq.f32.partialorder %v148, 8.507059e+37
  %v150 = vand.u32 %v138, 2147483648
  %v151 = vor.u32 1.1754944e-38, %v150
  %v152 = vsel %vm149, %v151, %v147
  %v153 = vmul.f32 %v128, %v152
  %v154 = vmin.f32 %v153, 1.0
  %v155 = vmax.f32 %v154, -1.0
  %v156 = vadd.f32 %v115, 1.0
  %v157 = vadd.f32 %v155, 1.0
  %v158 = vmul.f32 %v72, %v156
  %v159 = vmul.f32 %v73, %v157
  %v160 = vld [vmem:[#allocation2] sm:$0xff]
  %v161 = vld [vmem:[#allocation2 + $0x8] sm:$0xff]
  %v162 = vpack.c.bf16 %v159, %v158
  %v163 = vld [vmem:[%s3] sm:$0xf]
  %v164 = vld [vmem:[%s3 + $0x4] sm:$0xf]
  %v165 = vld [vmem:[%s3 + $0x8] sm:$0xf]
  %v166 = vld [vmem:[%s3 + $0xc] sm:$0xf]
  %v167 = vld [vmem:[%s3 + $0x10] sm:$0xf]
  %v168 = vld [vmem:[%s3 + $0x14] sm:$0xf]
  %v169 = vld [vmem:[%s3 + $0x18] sm:$0xf]
  %v170 = vld [vmem:[%s3 + $0x1c] sm:$0xf]
  %v179 = vunpack.c.l.b16 %v163
  %v180 = vunpack.c.l.b16 %v164
  %v181 = vunpack.c.l.b16 %v165
  %v182 = vunpack.c.l.b16 %v166
  %v183 = vunpack.c.l.b16 %v167
  %v184 = vunpack.c.l.b16 %v168
  %v185 = vunpack.c.l.b16 %v169
  %v186 = vunpack.c.l.b16 %v170
  %v187 = vpack.c.b16 %v180, %v179
  %v188 = vpack.c.b16 %v182, %v181
  %v189 = vpack.c.b16 %v184, %v183
  %v190 = vpack.c.b16 %v186, %v185
  %vm195 = vcmask 523264
  %v197 = vsel %vm195, %v162, 0
  %199 = vmatpush.bf16.msra.mxu0 0
  %200 = vmatpush.bf16.msra.mxu0 0
  %201 = vmatpush.bf16.msra.mxu0 0
  %202 = vmatpush.bf16.msra.mxu0 0
  %203 = vmatpush.bf16.msra.mxu0 %v190
  %204 = vmatpush.bf16.msra.mxu0 %v189
  %205 = vmatpush.bf16.msra.mxu0 %v188
  %206 = vmatpush.bf16.msra.mxu0 %v187
  %207 = vmatmul.bf16.gmra.mxu0 %v197
  %v208 = vpop.f32.mrf.mxu0
  %v209 = vadd.f32 0.0, %v208
  %v210 = vpop.f32.mrf.mxu0
  %v211 = vadd.f32 0.0, %v210
  %212 = vdwg.mxu0
  %v213 = vadd.f32 %v160, %v209
  %v214 = vadd.f32 %v161, %v211
  %215 = vst [vmem:[#allocation2] sm:$0xff] %v213
  %216 = vst [vmem:[#allocation2 + $0x8] sm:$0xff] %v214
  // Predicated region
  $region26: #{mlp_pallas.1} parent=0 // pred_check
    %p217 = pneg %p21
  $region27: #{mlp_pallas.1} parent=0 // pred_check_branch
    %219 = sbr.rel (%p217) target = $region29
  $region28: #{mlp_pallas.1} parent=0 // pred_region
    %v220 = vld [vmem:[#allocation2] sm:$0xff]
    %v221 = vld [vmem:[#allocation2 + $0x8] sm:$0xff]
    %v222 = vld [vmem:[%s4] sm:$0x1]
    %v224 = vperm.slane %v222, 0
    %v226 = vadd.f32 %v220, %v224
    %v227 = vadd.f32 %v221, %v224
    %228 = vst [vmem:[%s5] sm:$0xff] %v226
    %229 = vst [vmem:[%s5 + $0x8] sm:$0xff] %v227
  $region29: #{mlp_pallas.1} parent=0 // pred_fallthru
    _
  // Predicated region
  $region30: #{mlp_pallas.1} parent=0 // pred_check
    _
  $region31: #{mlp_pallas.1} parent=0 // pred_check_branch
    %231 = sbr.rel (0) target = $region33
  $region32: #{mlp_pallas.1} parent=0 // pred_region
    _
  $region33: #{mlp_pallas.1} parent=0 // pred_fallthru
    _
  // Predicated region
  $region34: #{mlp_pallas.1} parent=0 // pred_check
    _
  $region35: #{mlp_pallas.1} parent=0 // pred_check_branch
    %233 = sbr.rel (0) target = $region37
  $region36: #{mlp_pallas.1} parent=0 // pred_region
    _
  $region37: #{mlp_pallas.1} parent=0 // pred_fallthru
    _

</llo_original>
